<compile_context>
chip_gen: v7x
topology: tpu7x:2x2x1
jax: 0.10.0
libtpu: 0.0.40
codegen_flags: <defaults>
</compile_context>

<pallas_src>
import functools

import jax
import jax.numpy as jnp
from jax import lax
from jax.experimental import pallas as pl
from jax.experimental.pallas import tpu as pltpu


def _round_up(x, m):
    return ((x + m - 1) // m) * m


def _tpu_tuning():
    """Returns (vmem_limit_bytes, max_key_block), generation aware with a safe fallback."""
    vmem_cap = None
    try:
        vmem_cap = int(pltpu.get_tpu_info().vmem_capacity_bytes)
    except Exception:
        vmem_cap = None
    if vmem_cap is None:
        return 48 * 1024 * 1024, 512          # unknown chip: conservative, fits every gen
    if vmem_cap <= 80 * 1024 * 1024:          # v7x-class: 64 MiB physical VMEM per TC
        return 40 * 1024 * 1024, 256
    return 96 * 1024 * 1024, 512              # v5e / v6e: 128 MiB physical VMEM


def _pick_key_block(n, kb_max):
    """Largest MXU-friendly key block that divides N exactly (no padding / masking)."""
    for kb in (512, 256, 128):
        if kb <= kb_max and n % kb == 0:
            return kb
    return n                                   # ragged N: single un-tiled block


def _nonlocal_kernel(x_ref, w_ref, wm_ref, out_ref, cat_ref, y_ref,
                     *, ip, n, kb, n_blocks):
    # x_ref   : (1, c, 2n) f32   input slab for this batch element
    # w_ref   : (3*ip, c)  bf16  [phi; theta; g] 1x1-conv weights, rows zero-padded to ip
    # wm_ref  : (c, ip)    bf16  conv_mask weights, columns zero-padded to ip
    # out_ref : (1, c, 2n) f32
    # cat_ref : (3, 2*ip, n) bf16 scratch -- projections in the `.view(b,c,-1)` "cat"
    #                             layout: rows [0:ip] = left spatial half, [ip:2ip] = right
    # y_ref   : (2*ip, n)  f32  scratch -- attention-output accumulator
    x = x_ref[0]                               # (c, 2n) f32, kept for the residual add
    xl = x[:, :n].astype(jnp.bfloat16)         # (c, n) bf16 MXU operands
    xr = x[:, n:].astype(jnp.bfloat16)

    # --- phi / theta / g 1x1 convs (bf16 MXU, f32 accumulation) --------------
    for t in range(3):                         # 0 = phi, 1 = theta, 2 = g
        wt = w_ref[t * ip:(t + 1) * ip, :]     # (ip, c) bf16, aligned row band
        cat_ref[t, 0:ip, :] = jnp.dot(
            wt, xl, preferred_element_type=jnp.float32).astype(jnp.bfloat16)
        cat_ref[t, ip:2 * ip, :] = jnp.dot(
            wt, xr, preferred_element_type=jnp.float32).astype(jnp.bfloat16)

    # --- attention: softmax over queries (PyTorch dim=1), blocked over keys ---
    y_ref[...] = jnp.zeros_like(y_ref)

    def block_step(kbi):
        m0 = kbi * kb
        if not isinstance(m0, int):
            m0 = pl.multiple_of(m0, kb)
        phi_blk = cat_ref[0, :, pl.ds(m0, kb)]     # (2ip, kb) bf16
        g_blk = cat_ref[2, :, pl.ds(m0, kb)]       # (2ip, kb) bf16
        theta = cat_ref[1]                         # (2ip, n)  bf16
        # ST[m, q] = s[q, m]; one full-depth (2*ip) contraction replaces the
        # former pair of half-depth left/right dots.
        st = lax.dot_general(phi_blk, theta, (((0,), (0,)), ((), ())),
                             preferred_element_type=jnp.float32)      # (kb, n) f32
        st = st - jnp.max(st, axis=-1, keepdims=True)
        e = jnp.exp(st)
        inv_z = pl.reciprocal(jnp.sum(e, axis=-1, keepdims=True), approx=True)
        p = (e * inv_z).astype(jnp.bfloat16)       # p[m, q] = attn[q, m]
        y_ref[...] += jnp.dot(g_blk, p, preferred_element_type=jnp.float32)

    if n_blocks == 1:
        block_step(0)
    else:
        def _body(i, carry):
            block_step(i)
            return carry
        lax.fori_loop(0, n_blocks, _body, 0, unroll=(n_blocks <= 4))

    # --- conv_mask (1x1, inter -> c) + residual: two lane-dense half stores ---
    wm = wm_ref[...]                               # (c, ip) bf16
    out_ref[0, :, pl.ds(0, n)] = x[:, :n] + jnp.dot(
        wm, y_ref[0:ip, :].astype(jnp.bfloat16), preferred_element_type=jnp.float32)
    out_ref[0, :, pl.ds(n, n)] = x[:, n:] + jnp.dot(
        wm, y_ref[ip:2 * ip, :].astype(jnp.bfloat16), preferred_element_type=jnp.float32)


# --------------------------------- wrapper --------------------------------- #

def non_local_block(x, w_phi, w_theta, w_g, w_mask):
    b, c, h, w = x.shape
    inter = c // 2
    hw = h * w
    assert c % 2 == 0, "NonLocalBlock needs an even channel count"
    assert hw % 2 == 0, "NonLocalBlock's .view(b, c, -1) quirk needs even h*w"
    n = hw // 2                                    # tokens per attention "channel"
    ip = max(16, _round_up(inter, 16))             # bf16 sublane-aligned row bands

    vmem_limit, kb_max = _tpu_tuning()
    kb = _pick_key_block(n, kb_max)
    n_blocks = n // kb

    x_flat = x.reshape(b, c, hw).astype(jnp.float32)

    def _pad_rows(wm_, rows):
        z = jnp.zeros((rows, wm_.shape[1]), jnp.float32)
        return z.at[:wm_.shape[0]].set(wm_.astype(jnp.float32))

    # Zero-padded weights: pad rows/cols are mathematically inert.
    w_stack = jnp.concatenate(
        [_pad_rows(w_phi, ip), _pad_rows(w_theta, ip), _pad_rows(w_g, ip)],
        axis=0).astype(jnp.bfloat16)                                  # (3*ip, c)
    w_mask_p = jnp.zeros((c, ip), jnp.float32).at[:, :inter].set(
        w_mask.astype(jnp.float32)).astype(jnp.bfloat16)              # (c, ip)

    kernel = functools.partial(_nonlocal_kernel, ip=ip, n=n, kb=kb,
                               n_blocks=n_blocks)

    out = pl.pallas_call(
        kernel,
        out_shape=jax.ShapeDtypeStruct((b, c, hw), jnp.float32),
        grid_spec=pltpu.PrefetchScalarGridSpec(
            num_scalar_prefetch=0,
            grid=(b,),
            in_specs=[
                pl.BlockSpec((1, c, hw), lambda i: (i, 0, 0)),
                pl.BlockSpec((3 * ip, c), lambda i: (0, 0)),
                pl.BlockSpec((c, ip), lambda i: (0, 0)),
            ],
            out_specs=pl.BlockSpec((1, c, hw), lambda i: (i, 0, 0)),
            scratch_shapes=[
                pltpu.VMEM((3, 2 * ip, n), jnp.bfloat16),   # phi/theta/g "cat" layout
                pltpu.VMEM((2 * ip, n), jnp.float32),       # attention accumulator
            ],
        ),
        compiler_params=pltpu.CompilerParams(
            dimension_semantics=("parallel",),
            vmem_limit_bytes=vmem_limit,
        ),
    )(x_flat, w_stack, w_mask_p)

    return out.reshape(b, c, h, w)


# -------------------------------- reference -------------------------------- #

def non_local_block_ref(x, w_phi, w_theta, w_g, w_mask):
    b, c, h, w = x.shape
    inter = c // 2
    hw = h * w
    xf = x.reshape(b, c, hw)
    phi = jnp.einsum("oc,bcs->bos", w_phi, xf).reshape(b, c, -1)
    theta = jnp.einsum("oc,bcs->bos", w_theta, xf).reshape(b, c, -1).transpose(0, 2, 1)
    g = jnp.einsum("oc,bcs->bos", w_g, xf).reshape(b, c, -1).transpose(0, 2, 1)
    attn = jnp.einsum("bnc,bcm->bnm", theta, phi)
    attn = jax.nn.softmax(attn, axis=1)
    y = jnp.einsum("bnm,bmc->bnc", attn, g)
    y = y.transpose(0, 2, 1).reshape(b, inter, hw)
    mask = jnp.einsum("oc,bcs->bos", w_mask, y)
    return (mask + xf).reshape(b, c, h, w)


# ----------------------------------- main ----------------------------------- #

if __name__ == "__main__":
    key = jax.random.PRNGKey(0)
    b, c, h, w = 2, 4, 16, 16
    inter = c // 2

    k1, k2, k3, k4, k5 = jax.random.split(key, 5)
    x = jax.random.normal(k1, (b, c, h, w), dtype=jnp.float32)
    # deterministic synthetic weights (1x1 convs, no bias -> plain matrices)
    w_phi = 0.1 * jax.random.normal(k2, (inter, c), dtype=jnp.float32)
    w_theta = 0.1 * jax.random.normal(k3, (inter, c), dtype=jnp.float32)
    w_g = 0.1 * jax.random.normal(k4, (inter, c), dtype=jnp.float32)
    w_mask = 0.1 * jax.random.normal(k5, (c, inter), dtype=jnp.float32)

    out = non_local_block(x, w_phi, w_theta, w_g, w_mask)
    out = jax.block_until_ready(out)

    ref = non_local_block_ref(x, w_phi, w_theta, w_g, w_mask)
    assert out.shape == (b, c, h, w)
    # All matmuls run on the MXU in bf16 (f32 accumulation) and the softmax
    # denominator uses an approximate reciprocal, so tolerance is relaxed vs.
    # the pure-f32 reference.
    assert jnp.allclose(out, ref, atol=2e-2, rtol=2e-2), "mismatch vs reference"

    print("KERNEL_OK")
</pallas_src>

<mosaic_0001>
module attributes {stable_mosaic.version = 11 : i64} {
  func.func @_nonlocal_kernel(%arg0: i32, %arg1: memref<1x4x256xf32, #tpu.memory_space<vmem>>, %arg2: memref<48x4xbf16, #tpu.memory_space<vmem>>, %arg3: memref<4x16xbf16, #tpu.memory_space<vmem>>, %arg4: memref<1x4x256xf32, #tpu.memory_space<vmem>>, %arg5: memref<3x32x128xbf16, #tpu.memory_space<vmem>>, %arg6: memref<32x128xf32, #tpu.memory_space<vmem>>) attributes {dimension_semantics = [#tpu.dimension_semantics<parallel>], iteration_bounds = array<i64: 2>, scalar_prefetch = 0 : i64, scratch_operands = 2 : i64, tpu.core_type = #tpu.core_type<tc>, window_params = [{transform_indices = @transform_0, window_bounds = array<i64: 1, 4, 256>}, {pipeline_mode = #tpu.pipeline_mode<synchronous>, transform_indices = @transform_1, window_bounds = array<i64: 48, 4>}, {pipeline_mode = #tpu.pipeline_mode<synchronous>, transform_indices = @transform_2, window_bounds = array<i64: 4, 16>}, {transform_indices = @transform_3, window_bounds = array<i64: 1, 4, 256>}]} {
    %c0 = arith.constant 0 : index
    %c0_0 = arith.constant 0 : index
    %c0_1 = arith.constant 0 : index
    %0 = vector.load %arg1[%c0, %c0_0, %c0_1] : memref<1x4x256xf32, #tpu.memory_space<vmem>>, vector<1x4x256xf32>
    %1 = vector.shape_cast %0 : vector<1x4x256xf32> to vector<4x256xf32>
    %2 = vector.extract_strided_slice %1 {offsets = [0, 0], sizes = [4, 128], strides = [1, 1]} : vector<4x256xf32> to vector<4x128xf32>
    %3 = arith.truncf %2 : vector<4x128xf32> to vector<4x128xbf16>
    %4 = vector.extract_strided_slice %1 {offsets = [0, 128], sizes = [4, 128], strides = [1, 1]} : vector<4x256xf32> to vector<4x128xf32>
    %5 = arith.truncf %4 : vector<4x128xf32> to vector<4x128xbf16>
    %c0_2 = arith.constant 0 : index
    %c0_3 = arith.constant 0 : index
    %6 = vector.load %arg2[%c0_2, %c0_3] : memref<48x4xbf16, #tpu.memory_space<vmem>>, vector<16x4xbf16>
    %cst = arith.constant dense<0.000000e+00> : vector<16x128xf32>
    %7 = tpu.matmul %6, %3, %cst {dimension_numbers = #tpu.dot_dimension_numbers<[1], [0], [0], [1], [0, 0, 1, 1], [], []>} : vector<16x4xbf16>, vector<4x128xbf16>, vector<16x128xf32> -> vector<16x128xf32>
    %8 = arith.truncf %7 : vector<16x128xf32> to vector<16x128xbf16>
    %c0_4 = arith.constant 0 : index
    %c0_5 = arith.constant 0 : index
    %c0_6 = arith.constant 0 : index
    %9 = vector.load %arg5[%c0_4, %c0_5, %c0_6] : memref<3x32x128xbf16, #tpu.memory_space<vmem>>, vector<1x16x128xbf16>
    %10 = vector.shape_cast %9 : vector<1x16x128xbf16> to vector<16x128xbf16>
    %11 = vector.shape_cast %8 : vector<16x128xbf16> to vector<1x16x128xbf16>
    tpu.vector_store %arg5[%c0_4, %c0_5, %c0_6], %11 {strides = array<i32>} : memref<3x32x128xbf16, #tpu.memory_space<vmem>>, vector<1x16x128xbf16>,
    %cst_7 = arith.constant dense<0.000000e+00> : vector<16x128xf32>
    %12 = tpu.matmul %6, %5, %cst_7 {dimension_numbers = #tpu.dot_dimension_numbers<[1], [0], [0], [1], [0, 0, 1, 1], [], []>} : vector<16x4xbf16>, vector<4x128xbf16>, vector<16x128xf32> -> vector<16x128xf32>
    %13 = arith.truncf %12 : vector<16x128xf32> to vector<16x128xbf16>
    %c0_8 = arith.constant 0 : index
    %c16 = arith.constant 16 : index
    %c0_9 = arith.constant 0 : index
    %14 = vector.load %arg5[%c0_8, %c16, %c0_9] : memref<3x32x128xbf16, #tpu.memory_space<vmem>>, vector<1x16x128xbf16>
    %15 = vector.shape_cast %14 : vector<1x16x128xbf16> to vector<16x128xbf16>
    %16 = vector.shape_cast %13 : vector<16x128xbf16> to vector<1x16x128xbf16>
    tpu.vector_store %arg5[%c0_8, %c16, %c0_9], %16 {strides = array<i32>} : memref<3x32x128xbf16, #tpu.memory_space<vmem>>, vector<1x16x128xbf16>,
    %c16_10 = arith.constant 16 : index
    %c0_11 = arith.constant 0 : index
    %17 = vector.load %arg2[%c16_10, %c0_11] : memref<48x4xbf16, #tpu.memory_space<vmem>>, vector<16x4xbf16>
    %cst_12 = arith.constant dense<0.000000e+00> : vector<16x128xf32>
    %18 = tpu.matmul %17, %3, %cst_12 {dimension_numbers = #tpu.dot_dimension_numbers<[1], [0], [0], [1], [0, 0, 1, 1], [], []>} : vector<16x4xbf16>, vector<4x128xbf16>, vector<16x128xf32> -> vector<16x128xf32>
    %19 = arith.truncf %18 : vector<16x128xf32> to vector<16x128xbf16>
    %c1 = arith.constant 1 : index
    %c0_13 = arith.constant 0 : index
    %c0_14 = arith.constant 0 : index
    %20 = vector.load %arg5[%c1, %c0_13, %c0_14] : memref<3x32x128xbf16, #tpu.memory_space<vmem>>, vector<1x16x128xbf16>
    %21 = vector.shape_cast %20 : vector<1x16x128xbf16> to vector<16x128xbf16>
    %22 = vector.shape_cast %19 : vector<16x128xbf16> to vector<1x16x128xbf16>
    tpu.vector_store %arg5[%c1, %c0_13, %c0_14], %22 {strides = array<i32>} : memref<3x32x128xbf16, #tpu.memory_space<vmem>>, vector<1x16x128xbf16>,
    %cst_15 = arith.constant dense<0.000000e+00> : vector<16x128xf32>
    %23 = tpu.matmul %17, %5, %cst_15 {dimension_numbers = #tpu.dot_dimension_numbers<[1], [0], [0], [1], [0, 0, 1, 1], [], []>} : vector<16x4xbf16>, vector<4x128xbf16>, vector<16x128xf32> -> vector<16x128xf32>
    %24 = arith.truncf %23 : vector<16x128xf32> to vector<16x128xbf16>
    %c1_16 = arith.constant 1 : index
    %c16_17 = arith.constant 16 : index
    %c0_18 = arith.constant 0 : index
    %25 = vector.load %arg5[%c1_16, %c16_17, %c0_18] : memref<3x32x128xbf16, #tpu.memory_space<vmem>>, vector<1x16x128xbf16>
    %26 = vector.shape_cast %25 : vector<1x16x128xbf16> to vector<16x128xbf16>
    %27 = vector.shape_cast %24 : vector<16x128xbf16> to vector<1x16x128xbf16>
    tpu.vector_store %arg5[%c1_16, %c16_17, %c0_18], %27 {strides = array<i32>} : memref<3x32x128xbf16, #tpu.memory_space<vmem>>, vector<1x16x128xbf16>,
    %c32 = arith.constant 32 : index
    %c0_19 = arith.constant 0 : index
    %28 = vector.load %arg2[%c32, %c0_19] : memref<48x4xbf16, #tpu.memory_space<vmem>>, vector<16x4xbf16>
    %cst_20 = arith.constant dense<0.000000e+00> : vector<16x128xf32>
    %29 = tpu.matmul %28, %3, %cst_20 {dimension_numbers = #tpu.dot_dimension_numbers<[1], [0], [0], [1], [0, 0, 1, 1], [], []>} : vector<16x4xbf16>, vector<4x128xbf16>, vector<16x128xf32> -> vector<16x128xf32>
    %30 = arith.truncf %29 : vector<16x128xf32> to vector<16x128xbf16>
    %c2 = arith.constant 2 : index
    %c0_21 = arith.constant 0 : index
    %c0_22 = arith.constant 0 : index
    %31 = vector.load %arg5[%c2, %c0_21, %c0_22] : memref<3x32x128xbf16, #tpu.memory_space<vmem>>, vector<1x16x128xbf16>
    %32 = vector.shape_cast %31 : vector<1x16x128xbf16> to vector<16x128xbf16>
    %33 = vector.shape_cast %30 : vector<16x128xbf16> to vector<1x16x128xbf16>
    tpu.vector_store %arg5[%c2, %c0_21, %c0_22], %33 {strides = array<i32>} : memref<3x32x128xbf16, #tpu.memory_space<vmem>>, vector<1x16x128xbf16>,
    %cst_23 = arith.constant dense<0.000000e+00> : vector<16x128xf32>
    %34 = tpu.matmul %28, %5, %cst_23 {dimension_numbers = #tpu.dot_dimension_numbers<[1], [0], [0], [1], [0, 0, 1, 1], [], []>} : vector<16x4xbf16>, vector<4x128xbf16>, vector<16x128xf32> -> vector<16x128xf32>
    %35 = arith.truncf %34 : vector<16x128xf32> to vector<16x128xbf16>
    %c2_24 = arith.constant 2 : index
    %c16_25 = arith.constant 16 : index
    %c0_26 = arith.constant 0 : index
    %36 = vector.load %arg5[%c2_24, %c16_25, %c0_26] : memref<3x32x128xbf16, #tpu.memory_space<vmem>>, vector<1x16x128xbf16>
    %37 = vector.shape_cast %36 : vector<1x16x128xbf16> to vector<16x128xbf16>
    %38 = vector.shape_cast %35 : vector<16x128xbf16> to vector<1x16x128xbf16>
    tpu.vector_store %arg5[%c2_24, %c16_25, %c0_26], %38 {strides = array<i32>} : memref<3x32x128xbf16, #tpu.memory_space<vmem>>, vector<1x16x128xbf16>,
    %cst_27 = arith.constant 0.000000e+00 : f32
    %39 = vector.broadcast %cst_27 : f32 to vector<32x128xf32>
    %c0_28 = arith.constant 0 : index
    %c0_29 = arith.constant 0 : index
    %40 = vector.load %arg6[%c0_28, %c0_29] : memref<32x128xf32, #tpu.memory_space<vmem>>, vector<32x128xf32>
    tpu.vector_store %arg6[%c0_28, %c0_29], %39 {strides = array<i32>} : memref<32x128xf32, #tpu.memory_space<vmem>>, vector<32x128xf32>,
    %c0_30 = arith.constant 0 : index
    %c0_31 = arith.constant 0 : index
    %c0_32 = arith.constant 0 : index
    %41 = vector.load %arg5[%c0_30, %c0_31, %c0_32] : memref<3x32x128xbf16, #tpu.memory_space<vmem>>, vector<1x32x128xbf16>
    %42 = vector.shape_cast %41 : vector<1x32x128xbf16> to vector<32x128xbf16>
    %c2_33 = arith.constant 2 : index
    %c0_34 = arith.constant 0 : index
    %c0_35 = arith.constant 0 : index
    %43 = vector.load %arg5[%c2_33, %c0_34, %c0_35] : memref<3x32x128xbf16, #tpu.memory_space<vmem>>, vector<1x32x128xbf16>
    %44 = vector.shape_cast %43 : vector<1x32x128xbf16> to vector<32x128xbf16>
    %c1_36 = arith.constant 1 : index
    %c0_37 = arith.constant 0 : index
    %c0_38 = arith.constant 0 : index
    %45 = vector.load %arg5[%c1_36, %c0_37, %c0_38] : memref<3x32x128xbf16, #tpu.memory_space<vmem>>, vector<1x32x128xbf16>
    %46 = vector.shape_cast %45 : vector<1x32x128xbf16> to vector<32x128xbf16>
    %cst_39 = arith.constant dense<0.000000e+00> : vector<128x128xf32>
    %47 = tpu.matmul %42, %46, %cst_39 {dimension_numbers = #tpu.dot_dimension_numbers<[0], [0], [1], [1], [0, 1, 1, 1], [], []>} : vector<32x128xbf16>, vector<32x128xbf16>, vector<128x128xf32> -> vector<128x128xf32>
    %cst_40 = arith.constant dense<0xFF800000> : vector<128xf32>
    %48 = vector.multi_reduction <maximumf>, %47, %cst_40 [1] : vector<128x128xf32> to vector<128xf32>
    %49 = vector.shape_cast %48 : vector<128xf32> to vector<128x1xf32>
    %50 = vector.broadcast %49 : vector<128x1xf32> to vector<128x128xf32>
    %51 = arith.subf %47, %50 : vector<128x128xf32>
    %52 = math.exp %51 : vector<128x128xf32>
    %cst_41 = arith.constant dense<0.000000e+00> : vector<128xf32>
    %53 = vector.multi_reduction <add>, %52, %cst_41 [1] : vector<128x128xf32> to vector<128xf32>
    %54 = vector.shape_cast %53 : vector<128xf32> to vector<128x1xf32>
    %55 = tpu.reciprocal %54 {approx = true} : vector<128x1xf32> -> vector<128x1xf32>
    %56 = vector.broadcast %55 : vector<128x1xf32> to vector<128x128xf32>
    %57 = arith.mulf %52, %56 : vector<128x128xf32>
    %58 = arith.truncf %57 : vector<128x128xf32> to vector<128x128xbf16>
    %c0_42 = arith.constant 0 : index
    %c0_43 = arith.constant 0 : index
    %59 = vector.load %arg6[%c0_42, %c0_43] : memref<32x128xf32, #tpu.memory_space<vmem>>, vector<32x128xf32>
    %cst_44 = arith.constant dense<0.000000e+00> : vector<32x128xf32>
    %60 = tpu.matmul %44, %58, %cst_44 {dimension_numbers = #tpu.dot_dimension_numbers<[1], [0], [0], [1], [0, 0, 1, 1], [], []>} : vector<32x128xbf16>, vector<128x128xbf16>, vector<32x128xf32> -> vector<32x128xf32>
    %61 = arith.addf %59, %60 : vector<32x128xf32>
    %c0_45 = arith.constant 0 : index
    %c0_46 = arith.constant 0 : index
    %62 = vector.load %arg6[%c0_45, %c0_46] : memref<32x128xf32, #tpu.memory_space<vmem>>, vector<32x128xf32>
    tpu.vector_store %arg6[%c0_45, %c0_46], %61 {strides = array<i32>} : memref<32x128xf32, #tpu.memory_space<vmem>>, vector<32x128xf32>,
    %c0_47 = arith.constant 0 : index
    %c0_48 = arith.constant 0 : index
    %63 = vector.load %arg3[%c0_47, %c0_48] : memref<4x16xbf16, #tpu.memory_space<vmem>>, vector<4x16xbf16>
    %64 = vector.extract_strided_slice %1 {offsets = [0, 0], sizes = [4, 128], strides = [1, 1]} : vector<4x256xf32> to vector<4x128xf32>
    %c0_49 = arith.constant 0 : index
    %c0_50 = arith.constant 0 : index
    %65 = vector.load %arg6[%c0_49, %c0_50] : memref<32x128xf32, #tpu.memory_space<vmem>>, vector<16x128xf32>
    %66 = arith.truncf %65 : vector<16x128xf32> to vector<16x128xbf16>
    %cst_51 = arith.constant dense<0.000000e+00> : vector<4x128xf32>
    %67 = tpu.matmul %63, %66, %cst_51 {dimension_numbers = #tpu.dot_dimension_numbers<[1], [0], [0], [1], [0, 0, 1, 1], [], []>} : vector<4x16xbf16>, vector<16x128xbf16>, vector<4x128xf32> -> vector<4x128xf32>
    %68 = arith.addf %64, %67 : vector<4x128xf32>
    %c0_52 = arith.constant 0 : index
    %c0_53 = arith.constant 0 : index
    %c0_54 = arith.constant 0 : index
    %69 = vector.load %arg4[%c0_52, %c0_53, %c0_54] : memref<1x4x256xf32, #tpu.memory_space<vmem>>, vector<1x4x128xf32>
    %70 = vector.shape_cast %69 : vector<1x4x128xf32> to vector<4x128xf32>
    %71 = vector.shape_cast %68 : vector<4x128xf32> to vector<1x4x128xf32>
    tpu.vector_store %arg4[%c0_52, %c0_53, %c0_54], %71 {strides = array<i32>} : memref<1x4x256xf32, #tpu.memory_space<vmem>>, vector<1x4x128xf32>,
    %72 = vector.extract_strided_slice %1 {offsets = [0, 128], sizes = [4, 128], strides = [1, 1]} : vector<4x256xf32> to vector<4x128xf32>
    %c16_55 = arith.constant 16 : index
    %c0_56 = arith.constant 0 : index
    %73 = vector.load %arg6[%c16_55, %c0_56] : memref<32x128xf32, #tpu.memory_space<vmem>>, vector<16x128xf32>
    %74 = arith.truncf %73 : vector<16x128xf32> to vector<16x128xbf16>
    %cst_57 = arith.constant dense<0.000000e+00> : vector<4x128xf32>
    %75 = tpu.matmul %63, %74, %cst_57 {dimension_numbers = #tpu.dot_dimension_numbers<[1], [0], [0], [1], [0, 0, 1, 1], [], []>} : vector<4x16xbf16>, vector<16x128xbf16>, vector<4x128xf32> -> vector<4x128xf32>
    %76 = arith.addf %72, %75 : vector<4x128xf32>
    %c0_58 = arith.constant 0 : index
    %c0_59 = arith.constant 0 : index
    %c128 = arith.constant 128 : index
    %77 = vector.load %arg4[%c0_58, %c0_59, %c128] : memref<1x4x256xf32, #tpu.memory_space<vmem>>, vector<1x4x128xf32>
    %78 = vector.shape_cast %77 : vector<1x4x128xf32> to vector<4x128xf32>
    %79 = vector.shape_cast %76 : vector<4x128xf32> to vector<1x4x128xf32>
    tpu.vector_store %arg4[%c0_58, %c0_59, %c128], %79 {strides = array<i32>} : memref<1x4x256xf32, #tpu.memory_space<vmem>>, vector<1x4x128xf32>,
    return
  }
  func.func @transform_0(%arg0: i32) -> (i32, i32, i32) {
    %c0_i32 = arith.constant 0 : i32
    %c0_i32_0 = arith.constant 0 : i32
    %c0_i32_1 = arith.constant 0 : i32
    return %arg0, %c0_i32, %c0_i32_0 : i32, i32, i32
  }
  func.func @transform_1(%arg0: i32) -> (i32, i32) {
    %c0_i32 = arith.constant 0 : i32
    %c0_i32_0 = arith.constant 0 : i32
    %c0_i32_1 = arith.constant 0 : i32
    return %c0_i32, %c0_i32_0 : i32, i32
  }
  func.func @transform_2(%arg0: i32) -> (i32, i32) {
    %c0_i32 = arith.constant 0 : i32
    %c0_i32_0 = arith.constant 0 : i32
    %c0_i32_1 = arith.constant 0 : i32
    return %c0_i32, %c0_i32_0 : i32, i32
  }
  func.func @transform_3(%arg0: i32) -> (i32, i32, i32) {
    %c0_i32 = arith.constant 0 : i32
    %c0_i32_0 = arith.constant 0 : i32
    %c0_i32_1 = arith.constant 0 : i32
    return %arg0, %c0_i32, %c0_i32_0 : i32, i32, i32
  }
}

</mosaic_0001>

<llo_original>
// kernel: tpu_custom_call.1
$region0: #{tpu_custom_call.1}
  #allocation0 [shape = 'u32[]', space=smem, size = 0x4, offset = 0x4, fixed_abs, tag = 'smem constant byte address 0x4 - core index']
  #allocation1 [shape = 'u32[144,128]{1,0:T(1,128)}', space=vmem, size = 0x12000, scoped, tag = 'internal scratch']
  #allocation2 [shape = 'bf16[3,32,128]{2,1,0:T(16,128)(2,1)}', space=vmem, size = 0x6000, scoped, tag = 'scratch operand']
  #allocation3 [shape = 'f32[32,128]{1,0:T(8,128)}', space=vmem, size = 0x4000, scoped, tag = 'scratch operand']
  %s0 = inlined_call_operand.vmem [shape: f32[2,4,256], index: 0, kind: input, shape index: {}]
  %s1 = inlined_call_operand.vmem [shape: bf16[48,4], index: 1, kind: input, shape index: {}]
  %s2 = inlined_call_operand.vmem [shape: bf16[4,16], index: 2, kind: input, shape index: {}]
  %s3 = inlined_call_operand.hbm [shape: f32[2,4,256], index: 3, kind: output, shape index: {}]
  %s4 = sld [smem:[#allocation0]]
  $region45: #{tpu_custom_call.1} parent=0
    _
  %s6 = ssub.s32 1, %s4
  %s7 = scalar_select 0, %s6, %s4
  $region1: #{tpu_custom_call.1} parent=0
    #allocation4 [shape = 'u8[8192]{0}', space=vmem, size = 0x2000, scoped, tag = 'output window, operand 0']
    #allocation5 [shape = 's32[2]{0}', space=sflag, size = 0x8, scoped, tag = 'scoped memory for tpu_custom_call.1']
    %8 = vsyncpa [#allocation5], 0
    %s9 = scalar_lea.sflag [#allocation5], 1
    %10 = vsyncpa %s9, 0
    loop: start=0, step=1, limit=4
    $region2: #{tpu_custom_call.1} parent=1 // loop_pre_header
      _
    $region3: #{tpu_custom_call.1} parent=1 // loop_header
      %s12 = sphi 0, %s16
      %p13 = scmp.ge.s32.totalorder %s12, 4
      %s22 = sphi 0, %s24
      %s25 = sphi 0, %s22
      %s26 = sphi 0, %s25
      %s42 = sphi 0, %s26
      %s46 = sphi 0, %s46
      %s48 = sphi 0, %s46
      %s49 = sphi 0, %s48
      %s63 = sphi 0, %s49
      %s67 = sphi 0, %s67
      %s69 = sphi 0, %s67
      %s70 = sphi 0, %s69
      %s84 = sphi 0, %s70
      %s90 = sphi 0, %s92
      %s93 = sphi 0, %s90
      %s94 = sphi 0, %s93
      %s110 = sphi 0, %s94
    $region4: #{tpu_custom_call.1} parent=1 // loop_header_branch
      %15 = sbr.rel (%p13) target = $region8
    $region5: #{tpu_custom_call.1} parent=1 // loop_body
      %s17 = ssub.s32 %s12, 1
      %s18 = ssub.s32 %s12, 2
      %s19 = sadd.s32 %s12, 1
      %s20 = ssub.s32 %s12, %s19
      %p21 = scmp.eq.s32.totalorder %s20, 0
      %s23 = sadd.s32 %s22, 1
      %s24 = scalar_select %p21, %s22, %s23
      %p27 = pneg %p21
      %p28 = scmp.eq.s32.totalorder %s12, 1
      %p29 = por %p27, %p28
      %p30 = scmp.ne.s32.totalorder %s22, %s25
      %p31 = scmp.eq.s32.totalorder %s12, 0
      %p32 = por %p30, %p31
      %p33 = scmp.ne.s32.totalorder %s22, %s25
      %p34 = scmp.eq.s32.totalorder %s17, 1
      %p35 = por %p33, %p34
      %p36 = scmp.ne.s32.totalorder %s25, %s26
      %p37 = scmp.eq.s32.totalorder %s17, 0
      %p38 = por %p36, %p37
      %p39 = scmp.ne.s32.totalorder %s25, %s26
      %p40 = scmp.eq.s32.totalorder %s18, 1
      %p41 = por %p39, %p40
      %p43 = scmp.ne.s32.totalorder %s26, %s42
      %p44 = scmp.eq.s32.totalorder %s18, 0
      %p45 = por %p43, %p44
      %s47 = sadd.s32 %s46, 1
      %p50 = scmp.eq.s32.totalorder %s12, 1
      %p51 = scmp.ne.s32.totalorder %s46, %s48
      %p52 = scmp.eq.s32.totalorder %s12, 0
      %p53 = por %p51, %p52
      %p54 = scmp.ne.s32.totalorder %s46, %s48
      %p55 = scmp.eq.s32.totalorder %s17, 1
      %p56 = por %p54, %p55
      %p57 = scmp.ne.s32.totalorder %s48, %s49
      %p58 = scmp.eq.s32.totalorder %s17, 0
      %p59 = por %p57, %p58
      %p60 = scmp.ne.s32.totalorder %s48, %s49
      %p61 = scmp.eq.s32.totalorder %s18, 1
      %p62 = por %p60, %p61
      %p64 = scmp.ne.s32.totalorder %s49, %s63
      %p65 = scmp.eq.s32.totalorder %s18, 0
      %p66 = por %p64, %p65
      %s68 = sadd.s32 %s67, 1
      %p71 = scmp.eq.s32.totalorder %s12, 1
      %p72 = scmp.ne.s32.totalorder %s67, %s69
      %p73 = scmp.eq.s32.totalorder %s12, 0
      %p74 = por %p72, %p73
      %p75 = scmp.ne.s32.totalorder %s67, %s69
      %p76 = scmp.eq.s32.totalorder %s17, 1
      %p77 = por %p75, %p76
      %p78 = scmp.ne.s32.totalorder %s69, %s70
      %p79 = scmp.eq.s32.totalorder %s17, 0
      %p80 = por %p78, %p79
      %p81 = scmp.ne.s32.totalorder %s69, %s70
      %p82 = scmp.eq.s32.totalorder %s18, 1
      %p83 = por %p81, %p82
      %p85 = scmp.ne.s32.totalorder %s70, %s84
      %p86 = scmp.eq.s32.totalorder %s18, 0
      %p87 = por %p85, %p86
      %s88 = ssub.s32 %s12, %s19
      %p89 = scmp.eq.s32.totalorder %s88, 0
      %s91 = sadd.s32 %s90, 1
      %s92 = scalar_select %p89, %s90, %s91
      %p95 = pneg %p89
      %p96 = scmp.eq.s32.totalorder %s12, 1
      %p97 = por %p95, %p96
      %p98 = scmp.ne.s32.totalorder %s90, %s93
      %p99 = scmp.eq.s32.totalorder %s12, 0
      %p100 = por %p98, %p99
      %p101 = scmp.ne.s32.totalorder %s90, %s93
      %p102 = scmp.eq.s32.totalorder %s17, 1
      %p103 = por %p101, %p102
      %p104 = scmp.ne.s32.totalorder %s93, %s94
      %p105 = scmp.eq.s32.totalorder %s17, 0
      %p106 = por %p104, %p105
      %p107 = scmp.ne.s32.totalorder %s93, %s94
      %p108 = scmp.eq.s32.totalorder %s18, 1
      %p109 = por %p107, %p108
      %p111 = scmp.ne.s32.totalorder %s94, %s110
      %p112 = scmp.eq.s32.totalorder %s18, 0
      %p113 = por %p111, %p112
      %p114 = scmp.le.s32.totalorder 1, %s12
      %p115 = scmp.lt.s32.totalorder %s12, 3
      %p116 = pnand %p114, %p115
      %p117 = pneg %p116
      // Predicated region
      $region9: #{tpu_custom_call.1} parent=5 // pred_check
        _
      $region10: #{tpu_custom_call.1} parent=5 // pred_check_branch
        %119 = sbr.rel (%p116) target = $region12
      $region11: #{tpu_custom_call.1} parent=5 // pred_region
        %s120 = ssub.s32 %s12, 1
        // Predicated region
        $region13: #{tpu_custom_call.1} parent=11 // pred_check
          %p121 = pneg %p59
        $region14: #{tpu_custom_call.1} parent=11 // pred_check_branch
          %123 = sbr.rel (%p121) target = $region16
        $region15: #{tpu_custom_call.1} parent=11 // pred_region
          _
        $region16: #{tpu_custom_call.1} parent=11 // pred_fallthru
          _
        // Predicated region
        $region17: #{tpu_custom_call.1} parent=11 // pred_check
          %p124 = pneg %p80
        $region18: #{tpu_custom_call.1} parent=11 // pred_check_branch
          %126 = sbr.rel (%p124) target = $region20
        $region19: #{tpu_custom_call.1} parent=11 // pred_region
          _
        $region20: #{tpu_custom_call.1} parent=11 // pred_fallthru
          _
      $region12: #{tpu_custom_call.1} parent=5 // pred_fallthru
        _
      %p127 = scmp.lt.s32.totalorder %s12, 2
      // Predicated region
      $region21: #{tpu_custom_call.1} parent=5 // pred_check
        %p128 = pneg %p127
      $region22: #{tpu_custom_call.1} parent=5 // pred_check_branch
        %130 = sbr.rel (%p128) target = $region24
      $region23: #{tpu_custom_call.1} parent=5 // pred_region
        // Predicated region
        $region25: #{tpu_custom_call.1} parent=23 // pred_check
          %p131 = pneg %p32
        $region26: #{tpu_custom_call.1} parent=23 // pred_check_branch
          %133 = sbr.rel (%p131) target = $region28
        $region27: #{tpu_custom_call.1} parent=23 // pred_region
          %p134 = scmp.lt.s32.totalorder %s12, 1
          %s135 = scalar_select %p134, %s12, 1
          %s136 = smul.addr %s135, 2
          %s137 = smul.addr %s136, 4
          %s138 = scalar_lea.vmem %s0, %s137
        $region28: #{tpu_custom_call.1} parent=23 // pred_fallthru
          _
      $region24: #{tpu_custom_call.1} parent=5 // pred_fallthru
        _
      %p139 = scmp.le.s32.totalorder 1, %s12
      %p140 = scmp.lt.s32.totalorder %s12, 3
      %p141 = pnand %p139, %p140
      %p142 = pneg %p141
      // Predicated region
      $region29: #{tpu_custom_call.1} parent=5 // pred_check
        _
      $region30: #{tpu_custom_call.1} parent=5 // pred_check_branch
        %144 = sbr.rel (%p141) target = $region32
      $region31: #{tpu_custom_call.1} parent=5 // pred_region
        %s145 = ssub.s32 %s12, 1
        %p146 = scmp.lt.s32.totalorder %s17, 1
        %s147 = scalar_select %p146, %s17, 1
        %s148 = smul.addr %s147, 2
        %s149 = smul.addr %s148, 4
        %s150 = scalar_lea.vmem %s0, %s149
        %p151 = pneg %p38
        %p152 = pneg %p35
        %p153 = pneg %p59
        %p154 = pneg %p56
        %p155 = pneg %p80
        %p156 = pneg %p77
        %p157 = pneg %p106
        %p158 = pneg %p103
        %s159 = sand.u32 %s93, 1
        %s160 = scalar_lea.sflag [#allocation5], %s159
        %s161 = sand.u32 %s93, 1
        %s162 = smul.addr %s161, 8
        %s163 = scalar_lea.vmem [#allocation4], %s162
        %p164 = scmp.lt.s32.totalorder %s17, 1
        %s165 = scalar_select %p164, %s17, 1
        %s166 = smul.addr %s165, 2
        %s167 = smul.addr %s166, 4
        %s168 = scalar_lea.vmem %s0, %s167
        %v170 = vld [vmem:[%s168] sm:$0xff]
        %v171 = vpack.c.bf16 %v170, %v170
        %v173 = vcombine.high %v170, %v170
        %v175 = vpack.c.bf16 %v173, %v173
        %v176 = vld [vmem:[%s1] sm:$0xf]
        %v177 = vld [vmem:[%s1 + $0x4] sm:$0xf]
        %v180 = vunpack.c.l.b16 %v176
        %v181 = vunpack.c.l.b16 %v177
        %v182 = vpack.c.b16 %v181, %v180
        %vm183 = vcmask 31744
        %v185 = vsel %vm183, %v182, 0
        %vm187 = vcmask 1041408
        %v189 = vsel %vm187, %v171, 0
        %191 = vmatprep.subr.bf16.mxu0 0
        %192 = vmatpush1.bf16.msra.mxu0 %v189
        %193 = vmatprep.subr.bf16.mxu0 0
        %194 = vmatpush1.bf16.msra.mxu0 0
        %195 = vmatprep.subr.bf16.mxu0 0
        %196 = vmatpush1.bf16.msra.mxu0 0
        %197 = vmatprep.subr.bf16.mxu0 0
        %198 = vmatpush1.bf16.msra.mxu0 0
        %199 = vmatprep.subr.bf16.mxu0 0
        %200 = vmatpush1.bf16.msra.mxu0 0
        %201 = vmatprep.subr.bf16.mxu0 0
        %202 = vmatpush1.bf16.msra.mxu0 0
        %203 = vmatprep.subr.bf16.mxu0 0
        %204 = vmatpush1.bf16.msra.mxu0 0
        %205 = vmatprep.subr.bf16.mxu0 0
        %206 = vmatpush1.bf16.msra.mxu0 0
        %207 = vmatprep.subr.bf16.mxu0 0
        %208 = vmatpush1.bf16.msra.mxu0 0
        %209 = vmatprep.subr.bf16.mxu0 0
        %210 = vmatpush1.bf16.msra.mxu0 0
        %211 = vmatprep.subr.bf16.mxu0 0
        %212 = vmatpush1.bf16.msra.mxu0 0
        %213 = vmatprep.subr.bf16.mxu0 0
        %214 = vmatpush1.bf16.msra.mxu0 0
        %215 = vmatprep.subr.bf16.mxu0 0
        %216 = vmatpush1.bf16.msra.mxu0 0
        %217 = vmatprep.subr.bf16.mxu0 0
        %218 = vmatpush1.bf16.msra.mxu0 0
        %219 = vmatprep.subr.bf16.mxu0 0
        %220 = vmatpush1.bf16.msra.mxu0 0
        %221 = vmatprep.subr.bf16.mxu0 0
        %222 = vmatpush1.bf16.msra.mxu0 0
        %223 = vmatprep.mubr.bf16.mxu0 0
        %224 = vmatmul.mubr.bf16.gmra.mrb[0].mxu0 %v185
        %v225 = vpop.f32.mrb[0].mxu0
        %v226 = vadd.f32 0.0, %v225
        %v227 = vpop.f32.mrb[0].mxu0
        %v228 = vpop.f32.mrb[0].mxu0
        %v229 = vadd.f32 0.0, %v228
        %v230 = vpop.f32.mrb[0].mxu0
        %231 = vdwg.mxu0
        %v232 = vpack.c.bf16 %v229, %v226
        %233 = vst [vmem:[#allocation2] sm:$0xff] %v232
        %v235 = vsel %vm187, %v175, 0
        %237 = vmatprep.subr.bf16.mxu0 0
        %238 = vmatpush1.bf16.msra.mxu0 %v235
        %239 = vmatprep.subr.bf16.mxu0 0
        %240 = vmatpush1.bf16.msra.mxu0 0
        %241 = vmatprep.subr.bf16.mxu0 0
        %242 = vmatpush1.bf16.msra.mxu0 0
        %243 = vmatprep.subr.bf16.mxu0 0
        %244 = vmatpush1.bf16.msra.mxu0 0
        %245 = vmatprep.subr.bf16.mxu0 0
        %246 = vmatpush1.bf16.msra.mxu0 0
        %247 = vmatprep.subr.bf16.mxu0 0
        %248 = vmatpush1.bf16.msra.mxu0 0
        %249 = vmatprep.subr.bf16.mxu0 0
        %250 = vmatpush1.bf16.msra.mxu0 0
        %251 = vmatprep.subr.bf16.mxu0 0
        %252 = vmatpush1.bf16.msra.mxu0 0
        %253 = vmatprep.subr.bf16.mxu0 0
        %254 = vmatpush1.bf16.msra.mxu0 0
        %255 = vmatprep.subr.bf16.mxu0 0
        %256 = vmatpush1.bf16.msra.mxu0 0
        %257 = vmatprep.subr.bf16.mxu0 0
        %258 = vmatpush1.bf16.msra.mxu0 0
        %259 = vmatprep.subr.bf16.mxu0 0
        %260 = vmatpush1.bf16.msra.mxu0 0
        %261 = vmatprep.subr.bf16.mxu0 0
        %262 = vmatpush1.bf16.msra.mxu0 0
        %263 = vmatprep.subr.bf16.mxu0 0
        %264 = vmatpush1.bf16.msra.mxu0 0
        %265 = vmatprep.subr.bf16.mxu0 0
        %266 = vmatpush1.bf16.msra.mxu0 0
        %267 = vmatprep.subr.bf16.mxu0 0
        %268 = vmatpush1.bf16.msra.mxu0 0
        %269 = vmatprep.mubr.bf16.mxu0 0
        %270 = vmatmul.mubr.bf16.gmra.mrb[0].mxu0 %v185
        %v271 = vpop.f32.mrb[0].mxu0
        %v272 = vadd.f32 0.0, %v271
        %v273 = vpop.f32.mrb[0].mxu0
        %v274 = vpop.f32.mrb[0].mxu0
        %v275 = vadd.f32 0.0, %v274
        %v276 = vpop.f32.mrb[0].mxu0
        %277 = vdwg.mxu0
        %v278 = vpack.c.bf16 %v275, %v272
        %279 = vst [vmem:[#allocation2 + $0x8] sm:$0xff] %v278
        %v280 = vld [vmem:[%s1 + $0x8] sm:$0xf]
        %v281 = vld [vmem:[%s1 + $0xc] sm:$0xf]
        %v284 = vunpack.c.l.b16 %v280
        %v285 = vunpack.c.l.b16 %v281
        %v286 = vpack.c.b16 %v285, %v284
        %v288 = vsel %vm183, %v286, 0
        %290 = vmatprep.subr.bf16.mxu0 0
        %291 = vmatpush1.bf16.msra.mxu0 %v189
        %292 = vmatprep.subr.bf16.mxu0 0
        %293 = vmatpush1.bf16.msra.mxu0 0
        %294 = vmatprep.subr.bf16.mxu0 0
        %295 = vmatpush1.bf16.msra.mxu0 0
        %296 = vmatprep.subr.bf16.mxu0 0
        %297 = vmatpush1.bf16.msra.mxu0 0
        %298 = vmatprep.subr.bf16.mxu0 0
        %299 = vmatpush1.bf16.msra.mxu0 0
        %300 = vmatprep.subr.bf16.mxu0 0
        %301 = vmatpush1.bf16.msra.mxu0 0
        %302 = vmatprep.subr.bf16.mxu0 0
        %303 = vmatpush1.bf16.msra.mxu0 0
        %304 = vmatprep.subr.bf16.mxu0 0
        %305 = vmatpush1.bf16.msra.mxu0 0
        %306 = vmatprep.subr.bf16.mxu0 0
        %307 = vmatpush1.bf16.msra.mxu0 0
        %308 = vmatprep.subr.bf16.mxu0 0
        %309 = vmatpush1.bf16.msra.mxu0 0
        %310 = vmatprep.subr.bf16.mxu0 0
        %311 = vmatpush1.bf16.msra.mxu0 0
        %312 = vmatprep.subr.bf16.mxu0 0
        %313 = vmatpush1.bf16.msra.mxu0 0
        %314 = vmatprep.subr.bf16.mxu0 0
        %315 = vmatpush1.bf16.msra.mxu0 0
        %316 = vmatprep.subr.bf16.mxu0 0
        %317 = vmatpush1.bf16.msra.mxu0 0
        %318 = vmatprep.subr.bf16.mxu0 0
        %319 = vmatpush1.bf16.msra.mxu0 0
        %320 = vmatprep.subr.bf16.mxu0 0
        %321 = vmatpush1.bf16.msra.mxu0 0
        %322 = vmatprep.mubr.bf16.mxu0 0
        %323 = vmatmul.mubr.bf16.gmra.mrb[0].mxu0 %v288
        %v324 = vpop.f32.mrb[0].mxu0
        %v325 = vadd.f32 0.0, %v324
        %v326 = vpop.f32.mrb[0].mxu0
        %v327 = vpop.f32.mrb[0].mxu0
        %v328 = vadd.f32 0.0, %v327
        %v329 = vpop.f32.mrb[0].mxu0
        %330 = vdwg.mxu0
        %v331 = vpack.c.bf16 %v328, %v325
        %s332 = scalar_lea.vmem [#allocation2], 16
        %333 = vst [vmem:[%s332] sm:$0xff] %v331
        %334 = vmatprep.subr.bf16.mxu0 0
        %335 = vmatpush1.bf16.msra.mxu0 %v235
        %336 = vmatprep.subr.bf16.mxu0 0
        %337 = vmatpush1.bf16.msra.mxu0 0
        %338 = vmatprep.subr.bf16.mxu0 0
        %339 = vmatpush1.bf16.msra.mxu0 0
        %340 = vmatprep.subr.bf16.mxu0 0
        %341 = vmatpush1.bf16.msra.mxu0 0
        %342 = vmatprep.subr.bf16.mxu0 0
        %343 = vmatpush1.bf16.msra.mxu0 0
        %344 = vmatprep.subr.bf16.mxu0 0
        %345 = vmatpush1.bf16.msra.mxu0 0
        %346 = vmatprep.subr.bf16.mxu0 0
        %347 = vmatpush1.bf16.msra.mxu0 0
        %348 = vmatprep.subr.bf16.mxu0 0
        %349 = vmatpush1.bf16.msra.mxu0 0
        %350 = vmatprep.subr.bf16.mxu0 0
        %351 = vmatpush1.bf16.msra.mxu0 0
        %352 = vmatprep.subr.bf16.mxu0 0
        %353 = vmatpush1.bf16.msra.mxu0 0
        %354 = vmatprep.subr.bf16.mxu0 0
        %355 = vmatpush1.bf16.msra.mxu0 0
        %356 = vmatprep.subr.bf16.mxu0 0
        %357 = vmatpush1.bf16.msra.mxu0 0
        %358 = vmatprep.subr.bf16.mxu0 0
        %359 = vmatpush1.bf16.msra.mxu0 0
        %360 = vmatprep.subr.bf16.mxu0 0
        %361 = vmatpush1.bf16.msra.mxu0 0
        %362 = vmatprep.subr.bf16.mxu0 0
        %363 = vmatpush1.bf16.msra.mxu0 0
        %364 = vmatprep.subr.bf16.mxu0 0
        %365 = vmatpush1.bf16.msra.mxu0 0
        %366 = vmatprep.mubr.bf16.mxu0 0
        %367 = vmatmul.mubr.bf16.gmra.mrb[0].mxu0 %v288
        %v368 = vpop.f32.mrb[0].mxu0
        %v369 = vadd.f32 0.0, %v368
        %v370 = vpop.f32.mrb[0].mxu0
        %v371 = vpop.f32.mrb[0].mxu0
        %v372 = vadd.f32 0.0, %v371
        %v373 = vpop.f32.mrb[0].mxu0
        %374 = vdwg.mxu0
        %v375 = vpack.c.bf16 %v372, %v369
        %376 = vst [vmem:[%s332 + $0x8] sm:$0xff] %v375
        %v377 = vld [vmem:[%s1 + $0x10] sm:$0xf]
        %v378 = vld [vmem:[%s1 + $0x14] sm:$0xf]
        %v381 = vunpack.c.l.b16 %v377
        %v382 = vunpack.c.l.b16 %v378
        %v383 = vpack.c.b16 %v382, %v381
        %v385 = vsel %vm183, %v383, 0
        %387 = vmatprep.subr.bf16.mxu0 0
        %388 = vmatpush1.bf16.msra.mxu0 %v189
        %389 = vmatprep.subr.bf16.mxu0 0
        %390 = vmatpush1.bf16.msra.mxu0 0
        %391 = vmatprep.subr.bf16.mxu0 0
        %392 = vmatpush1.bf16.msra.mxu0 0
        %393 = vmatprep.subr.bf16.mxu0 0
        %394 = vmatpush1.bf16.msra.mxu0 0
        %395 = vmatprep.subr.bf16.mxu0 0
        %396 = vmatpush1.bf16.msra.mxu0 0
        %397 = vmatprep.subr.bf16.mxu0 0
        %398 = vmatpush1.bf16.msra.mxu0 0
        %399 = vmatprep.subr.bf16.mxu0 0
        %400 = vmatpush1.bf16.msra.mxu0 0
        %401 = vmatprep.subr.bf16.mxu0 0
        %402 = vmatpush1.bf16.msra.mxu0 0
        %403 = vmatprep.subr.bf16.mxu0 0
        %404 = vmatpush1.bf16.msra.mxu0 0
        %405 = vmatprep.subr.bf16.mxu0 0
        %406 = vmatpush1.bf16.msra.mxu0 0
        %407 = vmatprep.subr.bf16.mxu0 0
        %408 = vmatpush1.bf16.msra.mxu0 0
        %409 = vmatprep.subr.bf16.mxu0 0
        %410 = vmatpush1.bf16.msra.mxu0 0
        %411 = vmatprep.subr.bf16.mxu0 0
        %412 = vmatpush1.bf16.msra.mxu0 0
        %413 = vmatprep.subr.bf16.mxu0 0
        %414 = vmatpush1.bf16.msra.mxu0 0
        %415 = vmatprep.subr.bf16.mxu0 0
        %416 = vmatpush1.bf16.msra.mxu0 0
        %417 = vmatprep.subr.bf16.mxu0 0
        %418 = vmatpush1.bf16.msra.mxu0 0
        %419 = vmatprep.mubr.bf16.mxu0 0
        %420 = vmatmul.mubr.bf16.gmra.mrb[0].mxu0 %v385
        %v421 = vpop.f32.mrb[0].mxu0
        %v422 = vadd.f32 0.0, %v421
        %v423 = vpop.f32.mrb[0].mxu0
        %v424 = vpop.f32.mrb[0].mxu0
        %v425 = vadd.f32 0.0, %v424
        %v426 = vpop.f32.mrb[0].mxu0
        %427 = vdwg.mxu0
        %v428 = vpack.c.bf16 %v425, %v422
        %s429 = scalar_lea.vmem [#allocation2], 32
        %430 = vst [vmem:[%s429] sm:$0xff] %v428
        %431 = vmatprep.subr.bf16.mxu0 0
        %432 = vmatpush1.bf16.msra.mxu0 %v235
        %433 = vmatprep.subr.bf16.mxu0 0
        %434 = vmatpush1.bf16.msra.mxu0 0
        %435 = vmatprep.subr.bf16.mxu0 0
        %436 = vmatpush1.bf16.msra.mxu0 0
        %437 = vmatprep.subr.bf16.mxu0 0
        %438 = vmatpush1.bf16.msra.mxu0 0
        %439 = vmatprep.subr.bf16.mxu0 0
        %440 = vmatpush1.bf16.msra.mxu0 0
        %441 = vmatprep.subr.bf16.mxu0 0
        %442 = vmatpush1.bf16.msra.mxu0 0
        %443 = vmatprep.subr.bf16.mxu0 0
        %444 = vmatpush1.bf16.msra.mxu0 0
        %445 = vmatprep.subr.bf16.mxu0 0
        %446 = vmatpush1.bf16.msra.mxu0 0
        %447 = vmatprep.subr.bf16.mxu0 0
        %448 = vmatpush1.bf16.msra.mxu0 0
        %449 = vmatprep.subr.bf16.mxu0 0
        %450 = vmatpush1.bf16.msra.mxu0 0
        %451 = vmatprep.subr.bf16.mxu0 0
        %452 = vmatpush1.bf16.msra.mxu0 0
        %453 = vmatprep.subr.bf16.mxu0 0
        %454 = vmatpush1.bf16.msra.mxu0 0
        %455 = vmatprep.subr.bf16.mxu0 0
        %456 = vmatpush1.bf16.msra.mxu0 0
        %457 = vmatprep.subr.bf16.mxu0 0
        %458 = vmatpush1.bf16.msra.mxu0 0
        %459 = vmatprep.subr.bf16.mxu0 0
        %460 = vmatpush1.bf16.msra.mxu0 0
        %461 = vmatprep.subr.bf16.mxu0 0
        %462 = vmatpush1.bf16.msra.mxu0 0
        %463 = vmatprep.mubr.bf16.mxu0 0
        %464 = vmatmul.mubr.bf16.gmra.mrb[0].mxu0 %v385
        %v465 = vpop.f32.mrb[0].mxu0
        %v466 = vadd.f32 0.0, %v465
        %v467 = vpop.f32.mrb[0].mxu0
        %v468 = vpop.f32.mrb[0].mxu0
        %v469 = vadd.f32 0.0, %v468
        %v470 = vpop.f32.mrb[0].mxu0
        %471 = vdwg.mxu0
        %v472 = vpack.c.bf16 %v469, %v466
        %473 = vst [vmem:[%s429 + $0x8] sm:$0xff] %v472
        %474 = vst [vmem:[#allocation3] sm:$0xff] 0.0
        %475 = vst [vmem:[#allocation3 + $0x8] sm:$0xff] 0.0
        %476 = vst [vmem:[#allocation3 + $0x10] sm:$0xff] 0.0
        %477 = vst [vmem:[#allocation3 + $0x18] sm:$0xff] 0.0
        %v478 = vld [vmem:[#allocation2] sm:$0xff]
        %v479 = vld [vmem:[#allocation2 + $0x8] sm:$0xff]
        %v480 = vld [vmem:[%s429] sm:$0xff]
        %v481 = vld [vmem:[%s429 + $0x8] sm:$0xff]
        %v482 = vld [vmem:[%s332] sm:$0xff]
        %v483 = vld [vmem:[%s332 + $0x8] sm:$0xff]
        %484 = vxpose.xlu0.c.b16.start [1/8] %v478, 128
        %485 = vxpose.xlu0.c.b16.cont [2/8] %v479, 128
        %486 = vxpose.xlu0.c.b16.cont [3/8] 0, 128
        %487 = vxpose.xlu0.c.b16.cont [4/8] 0, 128
        %488 = vxpose.xlu0.c.b16.cont [5/8] 0, 128
        %489 = vxpose.xlu0.c.b16.cont [6/8] 0, 128
        %490 = vxpose.xlu0.c.b16.cont [7/8] 0, 128
        %491 = vxpose.xlu0.c.b16.end [8/8] 0, 128
        %v492 = vpop.trf.xlu0
        %v493 = vpop.trf.xlu0
        %v494 = vpop.trf.xlu0
        %v495 = vpop.trf.xlu0
        %v496 = vpop.trf.xlu0
        %v497 = vpop.trf.xlu0
        %v498 = vpop.trf.xlu0
        %v499 = vpop.trf.xlu0
        %vm500 = vcmask 261120
        %v502 = vsel %vm500, %v492, 0
        %v505 = vsel %vm500, %v493, 0
        %v508 = vsel %vm500, %v494, 0
        %v511 = vsel %vm500, %v495, 0
        %v514 = vsel %vm500, %v496, 0
        %v517 = vsel %vm500, %v497, 0
        %v520 = vsel %vm500, %v498, 0
        %v523 = vsel %vm500, %v499, 0
        %525 = vmatprep.subr.bf16.mxu0 0
        %526 = vmatpush1.bf16.msra.mxu0 %v482
        %527 = vmatprep.subr.bf16.mxu0 0
        %528 = vmatpush1.bf16.msra.mxu0 %v483
        %529 = vmatprep.subr.bf16.mxu0 0
        %530 = vmatpush1.bf16.msra.mxu0 0
        %531 = vmatprep.subr.bf16.mxu0 0
        %532 = vmatpush1.bf16.msra.mxu0 0
        %533 = vmatprep.subr.bf16.mxu0 0
        %534 = vmatpush1.bf16.msra.mxu0 0
        %535 = vmatprep.subr.bf16.mxu0 0
        %536 = vmatpush1.bf16.msra.mxu0 0
        %537 = vmatprep.subr.bf16.mxu0 0
        %538 = vmatpush1.bf16.msra.mxu0 0
        %539 = vmatprep.subr.bf16.mxu0 0
        %540 = vmatpush1.bf16.msra.mxu0 0
        %541 = vmatprep.subr.bf16.mxu0 0
        %542 = vmatpush1.bf16.msra.mxu0 0
        %543 = vmatprep.subr.bf16.mxu0 0
        %544 = vmatpush1.bf16.msra.mxu0 0
        %545 = vmatprep.subr.bf16.mxu0 0
        %546 = vmatpush1.bf16.msra.mxu0 0
        %547 = vmatprep.subr.bf16.mxu0 0
        %548 = vmatpush1.bf16.msra.mxu0 0
        %549 = vmatprep.subr.bf16.mxu0 0
        %550 = vmatpush1.bf16.msra.mxu0 0
        %551 = vmatprep.subr.bf16.mxu0 0
        %552 = vmatpush1.bf16.msra.mxu0 0
        %553 = vmatprep.subr.bf16.mxu0 0
        %554 = vmatpush1.bf16.msra.mxu0 0
        %555 = vmatprep.subr.bf16.mxu0 0
        %556 = vmatpush1.bf16.msra.mxu0 0
        %557 = vmatprep.mubr.bf16.mxu0 0
        %558 = vmatmul.mubr.bf16.gmra.mrb[0].mxu0 %v502
        %v559 = vpop.f32.mrb[0].mxu0
        %v560 = vadd.f32 0.0, %v559
        %v561 = vpop.f32.mrb[0].mxu0
        %v562 = vpop.f32.mrb[0].mxu0
        %v563 = vadd.f32 0.0, %v562
        %v564 = vpop.f32.mrb[0].mxu0
        %565 = vmatprep.mubr.bf16.mxu0 0
        %566 = vmatmul.mubr.bf16.gmra.mrb[0].mxu0 %v505
        %v567 = vpop.f32.mrb[0].mxu0
        %v568 = vadd.f32 0.0, %v567
        %v569 = vpop.f32.mrb[0].mxu0
        %v570 = vpop.f32.mrb[0].mxu0
        %v571 = vadd.f32 0.0, %v570
        %v572 = vpop.f32.mrb[0].mxu0
        %573 = vmatprep.mubr.bf16.mxu0 0
        %574 = vmatmul.mubr.bf16.gmra.mrb[0].mxu0 %v508
        %v575 = vpop.f32.mrb[0].mxu0
        %v576 = vadd.f32 0.0, %v575
        %v577 = vpop.f32.mrb[0].mxu0
        %v578 = vpop.f32.mrb[0].mxu0
        %v579 = vadd.f32 0.0, %v578
        %v580 = vpop.f32.mrb[0].mxu0
        %581 = vmatprep.mubr.bf16.mxu0 0
        %582 = vmatmul.mubr.bf16.gmra.mrb[0].mxu0 %v511
        %v583 = vpop.f32.mrb[0].mxu0
        %v584 = vadd.f32 0.0, %v583
        %v585 = vpop.f32.mrb[0].mxu0
        %v586 = vpop.f32.mrb[0].mxu0
        %v587 = vadd.f32 0.0, %v586
        %v588 = vpop.f32.mrb[0].mxu0
        %589 = vmatprep.mubr.bf16.mxu0 0
        %590 = vmatmul.mubr.bf16.gmra.mrb[0].mxu0 %v514
        %v591 = vpop.f32.mrb[0].mxu0
        %v592 = vadd.f32 0.0, %v591
        %v593 = vpop.f32.mrb[0].mxu0
        %v594 = vpop.f32.mrb[0].mxu0
        %v595 = vadd.f32 0.0, %v594
        %v596 = vpop.f32.mrb[0].mxu0
        %597 = vmatprep.mubr.bf16.mxu0 0
        %598 = vmatmul.mubr.bf16.gmra.mrb[0].mxu0 %v517
        %v599 = vpop.f32.mrb[0].mxu0
        %v600 = vadd.f32 0.0, %v599
        %v601 = vpop.f32.mrb[0].mxu0
        %v602 = vpop.f32.mrb[0].mxu0
        %v603 = vadd.f32 0.0, %v602
        %v604 = vpop.f32.mrb[0].mxu0
        %605 = vmatprep.mubr.bf16.mxu0 0
        %606 = vmatmul.mubr.bf16.gmra.mrb[0].mxu0 %v520
        %v607 = vpop.f32.mrb[0].mxu0
        %v608 = vadd.f32 0.0, %v607
        %v609 = vpop.f32.mrb[0].mxu0
        %v610 = vpop.f32.mrb[0].mxu0
        %v611 = vadd.f32 0.0, %v610
        %v612 = vpop.f32.mrb[0].mxu0
        %613 = vmatprep.mubr.bf16.mxu0 0
        %614 = vmatmul.mubr.bf16.gmra.mrb[0].mxu0 %v523
        %v615 = vpop.f32.mrb[0].mxu0
        %v616 = vadd.f32 0.0, %v615
        %v617 = vpop.f32.mrb[0].mxu0
        %v618 = vpop.f32.mrb[0].mxu0
        %v619 = vadd.f32 0.0, %v618
        %v620 = vpop.f32.mrb[0].mxu0
        %621 = vdwg.mxu0
        %622 = vmax.xlane.f32.xlu0 %v560
        %v623 = vpop.xlane.xlu0 %622
        %624 = vmax.xlane.f32.xlu0 %v563
        %v625 = vpop.xlane.xlu0 %624
        %626 = vmax.xlane.f32.xlu0 %v568
        %v627 = vpop.xlane.xlu0 %626
        %628 = vmax.xlane.f32.xlu0 %v571
        %v629 = vpop.xlane.xlu0 %628
        %630 = vmax.xlane.f32.xlu0 %v576
        %v631 = vpop.xlane.xlu0 %630
        %632 = vmax.xlane.f32.xlu0 %v579
        %v633 = vpop.xlane.xlu0 %632
        %634 = vmax.xlane.f32.xlu0 %v584
        %v635 = vpop.xlane.xlu0 %634
        %636 = vmax.xlane.f32.xlu0 %v587
        %v637 = vpop.xlane.xlu0 %636
        %638 = vmax.xlane.f32.xlu0 %v592
        %v639 = vpop.xlane.xlu0 %638
        %640 = vmax.xlane.f32.xlu0 %v595
        %v641 = vpop.xlane.xlu0 %640
        %642 = vmax.xlane.f32.xlu0 %v600
        %v643 = vpop.xlane.xlu0 %642
        %644 = vmax.xlane.f32.xlu0 %v603
        %v645 = vpop.xlane.xlu0 %644
        %646 = vmax.xlane.f32.xlu0 %v608
        %v647 = vpop.xlane.xlu0 %646
        %648 = vmax.xlane.f32.xlu0 %v611
        %v649 = vpop.xlane.xlu0 %648
        %650 = vmax.xlane.f32.xlu0 %v616
        %v651 = vpop.xlane.xlu0 %650
        %652 = vmax.xlane.f32.xlu0 %v619
        %v653 = vpop.xlane.xlu0 %652
        %v654 = vsub.f32 %v560, %v623
        %v655 = vsub.f32 %v563, %v625
        %v656 = vsub.f32 %v568, %v627
        %v657 = vsub.f32 %v571, %v629
        %v658 = vsub.f32 %v576, %v631
        %v659 = vsub.f32 %v579, %v633
        %v660 = vsub.f32 %v584, %v635
        %v661 = vsub.f32 %v587, %v637
        %v662 = vsub.f32 %v592, %v639
        %v663 = vsub.f32 %v595, %v641
        %v664 = vsub.f32 %v600, %v643
        %v665 = vsub.f32 %v603, %v645
        %v666 = vsub.f32 %v608, %v647
        %v667 = vsub.f32 %v611, %v649
        %v668 = vsub.f32 %v616, %v651
        %v669 = vsub.f32 %v619, %v653
        %v670 = vmul.f32 %v654, 1.442695
        %v671 = vpow.pop %v670
        %v672 = vmul.f32 %v655, 1.442695
        %v673 = vpow.pop %v672
        %v674 = vmul.f32 %v656, 1.442695
        %v675 = vpow.pop %v674
        %v676 = vmul.f32 %v657, 1.442695
        %v677 = vpow.pop %v676
        %v678 = vmul.f32 %v658, 1.442695
        %v679 = vpow.pop %v678
        %v680 = vmul.f32 %v659, 1.442695
        %v681 = vpow.pop %v680
        %v682 = vmul.f32 %v660, 1.442695
        %v683 = vpow.pop %v682
        %v684 = vmul.f32 %v661, 1.442695
        %v685 = vpow.pop %v684
        %v686 = vmul.f32 %v662, 1.442695
        %v687 = vpow.pop %v686
        %v688 = vmul.f32 %v663, 1.442695
        %v689 = vpow.pop %v688
        %v690 = vmul.f32 %v664, 1.442695
        %v691 = vpow.pop %v690
        %v692 = vmul.f32 %v665, 1.442695
        %v693 = vpow.pop %v692
        %v694 = vmul.f32 %v666, 1.442695
        %v695 = vpow.pop %v694
        %v696 = vmul.f32 %v667, 1.442695
        %v697 = vpow.pop %v696
        %v698 = vmul.f32 %v668, 1.442695
        %v699 = vpow.pop %v698
        %v700 = vmul.f32 %v669, 1.442695
        %v701 = vpow.pop %v700
        %702 = vadd.xlane.f32.xlu0 %v671
        %v703 = vpop.xlane.xlu0 %702
        %704 = vadd.xlane.f32.xlu0 %v673
        %v705 = vpop.xlane.xlu0 %704
        %706 = vadd.xlane.f32.xlu0 %v675
        %v707 = vpop.xlane.xlu0 %706
        %708 = vadd.xlane.f32.xlu0 %v677
        %v709 = vpop.xlane.xlu0 %708
        %710 = vadd.xlane.f32.xlu0 %v679
        %v711 = vpop.xlane.xlu0 %710
        %712 = vadd.xlane.f32.xlu0 %v681
        %v713 = vpop.xlane.xlu0 %712
        %714 = vadd.xlane.f32.xlu0 %v683
        %v715 = vpop.xlane.xlu0 %714
        %716 = vadd.xlane.f32.xlu0 %v685
        %v717 = vpop.xlane.xlu0 %716
        %718 = vadd.xlane.f32.xlu0 %v687
        %v719 = vpop.xlane.xlu0 %718
        %720 = vadd.xlane.f32.xlu0 %v689
        %v721 = vpop.xlane.xlu0 %720
        %722 = vadd.xlane.f32.xlu0 %v691
        %v723 = vpop.xlane.xlu0 %722
        %724 = vadd.xlane.f32.xlu0 %v693
        %v725 = vpop.xlane.xlu0 %724
        %726 = vadd.xlane.f32.xlu0 %v695
        %v727 = vpop.xlane.xlu0 %726
        %728 = vadd.xlane.f32.xlu0 %v697
        %v729 = vpop.xlane.xlu0 %728
        %730 = vadd.xlane.f32.xlu0 %v699
        %v731 = vpop.xlane.xlu0 %730
        %732 = vadd.xlane.f32.xlu0 %v701
        %v733 = vpop.xlane.xlu0 %732
        %v734 = vrcp.pop %v703
        %v735 = vrcp.pop %v705
        %v736 = vrcp.pop %v707
        %v737 = vrcp.pop %v709
        %v738 = vrcp.pop %v711
        %v739 = vrcp.pop %v713
        %v740 = vrcp.pop %v715
        %v741 = vrcp.pop %v717
        %v742 = vrcp.pop %v719
        %v743 = vrcp.pop %v721
        %v744 = vrcp.pop %v723
        %v745 = vrcp.pop %v725
        %v746 = vrcp.pop %v727
        %v747 = vrcp.pop %v729
        %v748 = vrcp.pop %v731
        %v749 = vrcp.pop %v733
        %v750 = vmul.f32 %v671, %v734
        %v751 = vmul.f32 %v673, %v735
        %v752 = vmul.f32 %v675, %v736
        %v753 = vmul.f32 %v677, %v737
        %v754 = vmul.f32 %v679, %v738
        %v755 = vmul.f32 %v681, %v739
        %v756 = vmul.f32 %v683, %v740
        %v757 = vmul.f32 %v685, %v741
        %v758 = vmul.f32 %v687, %v742
        %v759 = vmul.f32 %v689, %v743
        %v760 = vmul.f32 %v691, %v744
        %v761 = vmul.f32 %v693, %v745
        %v762 = vmul.f32 %v695, %v746
        %v763 = vmul.f32 %v697, %v747
        %v764 = vmul.f32 %v699, %v748
        %v765 = vmul.f32 %v701, %v749
        %v766 = vpack.c.bf16 %v751, %v750
        %v767 = vpack.c.bf16 %v753, %v752
        %v768 = vpack.c.bf16 %v755, %v754
        %v769 = vpack.c.bf16 %v757, %v756
        %v770 = vpack.c.bf16 %v759, %v758
        %v771 = vpack.c.bf16 %v761, %v760
        %v772 = vpack.c.bf16 %v763, %v762
        %v773 = vpack.c.bf16 %v765, %v764
        %v774 = vld [vmem:[#allocation3] sm:$0xff]
        %v775 = vld [vmem:[#allocation3 + $0x8] sm:$0xff]
        %v776 = vld [vmem:[#allocation3 + $0x10] sm:$0xff]
        %v777 = vld [vmem:[#allocation3 + $0x18] sm:$0xff]
        %778 = vmatprep.subr.bf16.mxu0 0
        %779 = vmatpush1.bf16.msra.mxu0 %v766
        %780 = vmatprep.subr.bf16.mxu0 0
        %781 = vmatpush1.bf16.msra.mxu0 %v767
        %782 = vmatprep.subr.bf16.mxu0 0
        %783 = vmatpush1.bf16.msra.mxu0 %v768
        %784 = vmatprep.subr.bf16.mxu0 0
        %785 = vmatpush1.bf16.msra.mxu0 %v769
        %786 = vmatprep.subr.bf16.mxu0 0
        %787 = vmatpush1.bf16.msra.mxu0 %v770
        %788 = vmatprep.subr.bf16.mxu0 0
        %789 = vmatpush1.bf16.msra.mxu0 %v771
        %790 = vmatprep.subr.bf16.mxu0 0
        %791 = vmatpush1.bf16.msra.mxu0 %v772
        %792 = vmatprep.subr.bf16.mxu0 0
        %793 = vmatpush1.bf16.msra.mxu0 %v773
        %794 = vmatprep.subr.bf16.mxu0 0
        %795 = vmatpush1.bf16.msra.mxu0 0
        %796 = vmatprep.subr.bf16.mxu0 0
        %797 = vmatpush1.bf16.msra.mxu0 0
        %798 = vmatprep.subr.bf16.mxu0 0
        %799 = vmatpush1.bf16.msra.mxu0 0
        %800 = vmatprep.subr.bf16.mxu0 0
        %801 = vmatpush1.bf16.msra.mxu0 0
        %802 = vmatprep.subr.bf16.mxu0 0
        %803 = vmatpush1.bf16.msra.mxu0 0
        %804 = vmatprep.subr.bf16.mxu0 0
        %805 = vmatpush1.bf16.msra.mxu0 0
        %806 = vmatprep.subr.bf16.mxu0 0
        %807 = vmatpush1.bf16.msra.mxu0 0
        %808 = vmatprep.subr.bf16.mxu0 0
        %809 = vmatpush1.bf16.msra.mxu0 0
        %810 = vmatprep.mubr.bf16.mxu0 0
        %811 = vmatmul.mubr.bf16.gmra.mrb[0].mxu0 %v480
        %v812 = vpop.f32.mrb[0].mxu0
        %v813 = vadd.f32 0.0, %v812
        %v814 = vpop.f32.mrb[0].mxu0
        %v815 = vpop.f32.mrb[0].mxu0
        %v816 = vadd.f32 0.0, %v815
        %v817 = vpop.f32.mrb[0].mxu0
        %818 = vmatprep.mubr.bf16.mxu0 0
        %819 = vmatmul.mubr.bf16.gmra.mrb[0].mxu0 %v481
        %v820 = vpop.f32.mrb[0].mxu0
        %v821 = vadd.f32 0.0, %v820
        %v822 = vpop.f32.mrb[0].mxu0
        %v823 = vpop.f32.mrb[0].mxu0
        %v824 = vadd.f32 0.0, %v823
        %v825 = vpop.f32.mrb[0].mxu0
        %826 = vdwg.mxu0
        %v827 = vadd.f32 %v774, %v813
        %v828 = vadd.f32 %v775, %v816
        %v829 = vadd.f32 %v776, %v821
        %v830 = vadd.f32 %v777, %v824
        %831 = vst [vmem:[#allocation3] sm:$0xff] %v827
        %832 = vst [vmem:[#allocation3 + $0x8] sm:$0xff] %v828
        %833 = vst [vmem:[#allocation3 + $0x10] sm:$0xff] %v829
        %834 = vst [vmem:[#allocation3 + $0x18] sm:$0xff] %v830
        %v835 = vld [vmem:[%s2] sm:$0x3]
        %v836 = vld [vmem:[#allocation3] sm:$0xff]
        %v837 = vld [vmem:[#allocation3 + $0x8] sm:$0xff]
        %v838 = vpack.c.bf16 %v837, %v836
        %vm839 = vcmask 130048
        %v841 = vsel %vm839, %v835, 0
        %843 = vmatprep.subr.bf16.mxu0 0
        %844 = vmatpush1.bf16.msra.mxu0 %v838
        %845 = vmatprep.subr.bf16.mxu0 0
        %846 = vmatpush1.bf16.msra.mxu0 0
        %847 = vmatprep.subr.bf16.mxu0 0
        %848 = vmatpush1.bf16.msra.mxu0 0
        %849 = vmatprep.subr.bf16.mxu0 0
        %850 = vmatpush1.bf16.msra.mxu0 0
        %851 = vmatprep.subr.bf16.mxu0 0
        %852 = vmatpush1.bf16.msra.mxu0 0
        %853 = vmatprep.subr.bf16.mxu0 0
        %854 = vmatpush1.bf16.msra.mxu0 0
        %855 = vmatprep.subr.bf16.mxu0 0
        %856 = vmatpush1.bf16.msra.mxu0 0
        %857 = vmatprep.subr.bf16.mxu0 0
        %858 = vmatpush1.bf16.msra.mxu0 0
        %859 = vmatprep.subr.bf16.mxu0 0
        %860 = vmatpush1.bf16.msra.mxu0 0
        %861 = vmatprep.subr.bf16.mxu0 0
        %862 = vmatpush1.bf16.msra.mxu0 0
        %863 = vmatprep.subr.bf16.mxu0 0
        %864 = vmatpush1.bf16.msra.mxu0 0
        %865 = vmatprep.subr.bf16.mxu0 0
        %866 = vmatpush1.bf16.msra.mxu0 0
        %867 = vmatprep.subr.bf16.mxu0 0
        %868 = vmatpush1.bf16.msra.mxu0 0
        %869 = vmatprep.subr.bf16.mxu0 0
        %870 = vmatpush1.bf16.msra.mxu0 0
        %871 = vmatprep.subr.bf16.mxu0 0
        %872 = vmatpush1.bf16.msra.mxu0 0
        %873 = vmatprep.subr.bf16.mxu0 0
        %874 = vmatpush1.bf16.msra.mxu0 0
        %875 = vmatprep.mubr.bf16.mxu0 0
        %876 = vmatmul.mubr.bf16.gmra.mrb[0].mxu0 %v841
        %v877 = vpop.f32.mrb[0].mxu0
        %v878 = vadd.f32 0.0, %v877
        %v879 = vpop.f32.mrb[0].mxu0
        %v880 = vpop.f32.mrb[0].mxu0
        %v881 = vpop.f32.mrb[0].mxu0
        %882 = vdwg.mxu0
        %v883 = vadd.f32 %v170, %v878
        %884 = vst [vmem:[%s163] sm:$0xf] %v883
        %v885 = vld [vmem:[#allocation3 + $0x10] sm:$0xff]
        %v886 = vld [vmem:[#allocation3 + $0x18] sm:$0xff]
        %v887 = vpack.c.bf16 %v886, %v885
        %888 = vmatprep.subr.bf16.mxu0 0
        %889 = vmatpush1.bf16.msra.mxu0 %v887
        %890 = vmatprep.subr.bf16.mxu0 0
        %891 = vmatpush1.bf16.msra.mxu0 0
        %892 = vmatprep.subr.bf16.mxu0 0
        %893 = vmatpush1.bf16.msra.mxu0 0
        %894 = vmatprep.subr.bf16.mxu0 0
        %895 = vmatpush1.bf16.msra.mxu0 0
        %896 = vmatprep.subr.bf16.mxu0 0
        %897 = vmatpush1.bf16.msra.mxu0 0
        %898 = vmatprep.subr.bf16.mxu0 0
        %899 = vmatpush1.bf16.msra.mxu0 0
        %900 = vmatprep.subr.bf16.mxu0 0
        %901 = vmatpush1.bf16.msra.mxu0 0
        %902 = vmatprep.subr.bf16.mxu0 0
        %903 = vmatpush1.bf16.msra.mxu0 0
        %904 = vmatprep.subr.bf16.mxu0 0
        %905 = vmatpush1.bf16.msra.mxu0 0
        %906 = vmatprep.subr.bf16.mxu0 0
        %907 = vmatpush1.bf16.msra.mxu0 0
        %908 = vmatprep.subr.bf16.mxu0 0
        %909 = vmatpush1.bf16.msra.mxu0 0
        %910 = vmatprep.subr.bf16.mxu0 0
        %911 = vmatpush1.bf16.msra.mxu0 0
        %912 = vmatprep.subr.bf16.mxu0 0
        %913 = vmatpush1.bf16.msra.mxu0 0
        %914 = vmatprep.subr.bf16.mxu0 0
        %915 = vmatpush1.bf16.msra.mxu0 0
        %916 = vmatprep.subr.bf16.mxu0 0
        %917 = vmatpush1.bf16.msra.mxu0 0
        %918 = vmatprep.subr.bf16.mxu0 0
        %919 = vmatpush1.bf16.msra.mxu0 0
        %920 = vmatprep.mubr.bf16.mxu0 0
        %921 = vmatmul.mubr.bf16.gmra.mrb[0].mxu0 %v841
        %v922 = vpop.f32.mrb[0].mxu0
        %v923 = vadd.f32 0.0, %v922
        %v924 = vpop.f32.mrb[0].mxu0
        %v925 = vpop.f32.mrb[0].mxu0
        %v926 = vpop.f32.mrb[0].mxu0
        %927 = vdwg.mxu0
        %v928 = vrot.slane %v170, 4
        %v930 = vadd.f32 %v928, %v923
        %931 = vst [vmem:[%s163 + $0x4] sm:$0xf] %v930
        %s932 = sand.u32 %s93, 1
        %s933 = scalar_lea.sflag [#allocation5], %s932
        %s934 = sand.u32 %s93, 1
        %s935 = smul.addr %s934, 8
        %s936 = scalar_lea.vmem [#allocation4], %s935
        // Predicated region
        $region33: #{tpu_custom_call.1} parent=31 // pred_check
          %p937 = pneg %p103
        $region34: #{tpu_custom_call.1} parent=31 // pred_check_branch
          %939 = sbr.rel (%p937) target = $region36
        $region35: #{tpu_custom_call.1} parent=31 // pred_region
          %s941 = ssub.s32 128, 128
          %942 = vsyncadd %s933, %s941
          %s943 = smul.addr %s17, 2
          %s944 = smul.addr %s943, 64
          %s945 = scalar_lea.hbm %s3, %s944
          %s947 = sshll.u32 %s936, 4
          %s948 = int_to_ptr.vmem [resolvable:$true] %s947
          %950 = dma.vmem_to_hbm [thread:$0]  %s948, 128, %s945, %s933
        $region36: #{tpu_custom_call.1} parent=31 // pred_fallthru
          _
      $region32: #{tpu_custom_call.1} parent=5 // pred_fallthru
        _
      %p951 = scmp.le.s32.totalorder 2, %s12
      // Predicated region
      $region37: #{tpu_custom_call.1} parent=5 // pred_check
        %p952 = pneg %p951
      $region38: #{tpu_custom_call.1} parent=5 // pred_check_branch
        %954 = sbr.rel (%p952) target = $region40
      $region39: #{tpu_custom_call.1} parent=5 // pred_region
        %s955 = ssub.s32 %s12, 2
        // Predicated region
        $region41: #{tpu_custom_call.1} parent=39 // pred_check
          %p956 = pneg %p109
        $region42: #{tpu_custom_call.1} parent=39 // pred_check_branch
          %958 = sbr.rel (%p956) target = $region44
        $region43: #{tpu_custom_call.1} parent=39 // pred_region
          %s959 = sand.u32 %s94, 1
          %s960 = scalar_lea.sflag [#allocation5], %s959
          %s961 = sand.u32 %s94, 1
          %s962 = smul.addr %s961, 8
          %s963 = scalar_lea.vmem [#allocation4], %s962
          %964 = dma.done %s960, 128
        $region44: #{tpu_custom_call.1} parent=39 // pred_fallthru
          _
      $region40: #{tpu_custom_call.1} parent=5 // pred_fallthru
        _
    $region6: #{tpu_custom_call.1} parent=1 // loop_footer
      %s16 = sadd.s32 1, %s12
    $region7: #{tpu_custom_call.1} parent=1 // loop_footer_branch
      %11 = sbr.rel target = $region3
    $region8: #{tpu_custom_call.1} parent=1 // loop_exit
      _
    %965 = vsyncpa [#allocation5], 1
    %s966 = scalar_lea.sflag [#allocation5], 1
    %967 = vsyncpa %s966, 1

</llo_original>
